<compile_context>
chip_gen: v5e
topology: v5e:2x2
jax: 0.10.0
libtpu: 0.0.40
codegen_flags: <defaults>
</compile_context>

<pallas_src>
import functools

import jax
import jax.numpy as jnp
from jax.experimental import pallas as pl
from jax.experimental.pallas import tpu as pltpu

LANE = 128       # lane width: last-dim alignment for dense (unmasked) stores
SUBLANE = 8      # f32 sublane packing
MIN_SPLIT = 512  # batches >= 2*MIN_SPLIT rows get >= 2 grid blocks (v7x megacore)


def _round_up(n, m):
    return (n + m - 1) // m * m


def mlp_kernel(x_ref, w1_ref, b1_ref, w2_ref, b2_ref, w3_ref, b3_ref, o_ref):
    """Fused fc1 -> ReLU -> fc2 -> ReLU -> fc3 on one (bm, *) batch tile.

    fc1 runs in f32 (K=64 is cheap, keeps accuracy, avoids a wrapper cast of x);
    fc2/fc3 take bf16 hidden activations against bf16 weights with f32 accumulation.
    Bias add + ReLU stay in f32 (v5e has no bf16 VPU path).
    """
    x = x_ref[...]                                                    # f32 (bm, 64)
    h1 = jnp.dot(x, w1_ref[...], preferred_element_type=jnp.float32) + b1_ref[...]
    h1 = jnp.maximum(h1, 0.0)
    h2 = jnp.dot(h1.astype(jnp.bfloat16), w2_ref[...],
                 preferred_element_type=jnp.float32) + b2_ref[...]
    h2 = jnp.maximum(h2, 0.0)
    h3 = jnp.dot(h2.astype(jnp.bfloat16), w3_ref[...],
                 preferred_element_type=jnp.float32) + b3_ref[...]
    o_ref[...] = h3                                                   # f32, lane-dense store


def prepare_params(params):
    """One-time prep: lane-pad feature dims and cast fc2/fc3 weights to bf16.

    Zero padding keeps the math exact: padded weight columns + zero bias lanes
    stay zero through the ReLUs, padded weight rows multiply zero activations,
    and padded output lanes are sliced off at the end.
    """
    w1, b1, w2, b2, w3, b3 = params
    hid = w1.shape[1]
    out_f = w3.shape[1]
    hid_p, out_p = _round_up(hid, LANE), _round_up(out_f, LANE)

    w1p = jnp.pad(w1, ((0, 0), (0, hid_p - hid)))                         # f32 (in, hid_p)
    w2p = jnp.pad(w2, ((0, hid_p - hid), (0, hid_p - hid))).astype(jnp.bfloat16)
    w3p = jnp.pad(w3, ((0, hid_p - hid), (0, out_p - out_f))).astype(jnp.bfloat16)
    b1p = jnp.pad(b1, ((0, 0), (0, hid_p - hid)))                         # f32
    b2p = jnp.pad(b2, ((0, 0), (0, hid_p - hid)))                         # f32
    b3p = jnp.pad(b3, ((0, 0), (0, out_p - out_f)))                       # f32
    return (w1p, b1p, w2p, b2p, w3p, b3p), out_f


@functools.partial(jax.jit, static_argnames=("out_features", "bm_max"))
def mlp_forward(x, prepped, out_features, *, bm_max=2048):
    """y = fc3(relu(fc2(relu(fc1(x))))), using pre-padded params from prepare_params."""
    w1p, b1p, w2p, b2p, w3p, b3p = prepped
    B, in_f = x.shape
    hid_p = w1p.shape[1]
    out_p = w3p.shape[1]

    # Batch tiling: only sublane-align small batches; split big batches into
    # large tiles (>= 2 blocks when possible so both v7x TensorCores work).
    B_sub = _round_up(B, SUBLANE)
    if B_sub > bm_max:
        bm = bm_max                                    # multiple of 256 by convention
    elif B_sub >= 2 * MIN_SPLIT:
        bm = _round_up(-(-B_sub // 2), SUBLANE)        # two blocks for megacore
    else:
        bm = B_sub                                     # single block, no waste
    B_p = _round_up(B_sub, bm)
    n_blocks = B_p // bm

    xp = x if B_p == B else jnp.pad(x, ((0, B_p - B), (0, 0)))   # f32, no feature pad

    # Weights / biases: same block for every grid step -> stay VMEM-resident.
    resident = lambda a: pl.BlockSpec(a.shape, lambda i: (0,) * a.ndim)

    flops = 2 * B_p * (in_f * hid_p + hid_p * hid_p + hid_p * out_p)
    bytes_accessed = (xp.size * 4                                    # f32 x stream
                      + w1p.size * 4 + (w2p.size + w3p.size) * 2    # resident weights
                      + (b1p.size + b2p.size + b3p.size) * 4
                      + B_p * out_p * 4)                             # f32 output stream

    out_padded = pl.pallas_call(
        mlp_kernel,
        out_shape=jax.ShapeDtypeStruct((B_p, out_p), jnp.float32),
        grid_spec=pltpu.PrefetchScalarGridSpec(
            num_scalar_prefetch=0,
            grid=(n_blocks,),
            in_specs=[
                pl.BlockSpec((bm, in_f), lambda i: (i, 0)),   # x: one batch tile per step
                resident(w1p), resident(b1p),
                resident(w2p), resident(b2p),
                resident(w3p), resident(b3p),
            ],
            out_specs=pl.BlockSpec((bm, out_p), lambda i: (i, 0)),
        ),
        compiler_params=pltpu.CompilerParams(
            dimension_semantics=("parallel",),      # megacore-shardable batch axis
            vmem_limit_bytes=24 * 1024 * 1024,      # ~10 MiB used at bm=2048; v7x-safe
        ),
        cost_estimate=pl.CostEstimate(
            flops=flops, transcendentals=0, bytes_accessed=bytes_accessed),
    )(xp, w1p, b1p, w2p, b2p, w3p, b3p)

    return out_padded[:B, :out_features]


def init_params(key, input_size, hidden_layer, output_size):
    """Deterministic init mimicking nn.Linear's uniform(-1/sqrt(fan_in), 1/sqrt(fan_in))."""
    def linear(key, fan_in, fan_out):
        kw, kb = jax.random.split(key)
        bound = 1.0 / jnp.sqrt(fan_in)
        # stored as (in, out) == PyTorch weight.T
        w = jax.random.uniform(kw, (fan_in, fan_out), jnp.float32, -bound, bound)
        b = jax.random.uniform(kb, (1, fan_out), jnp.float32, -bound, bound)
        return w, b

    k1, k2, k3 = jax.random.split(key, 3)
    w1, b1 = linear(k1, input_size, hidden_layer)
    w2, b2 = linear(k2, hidden_layer, hidden_layer)
    w3, b3 = linear(k3, hidden_layer, output_size)
    return (w1, b1, w2, b2, w3, b3)


def mlp_reference(x, params):
    w1, b1, w2, b2, w3, b3 = params
    h = jnp.maximum(x @ w1 + b1, 0.0)
    h = jnp.maximum(h @ w2 + b2, 0.0)
    return h @ w3 + b3


if __name__ == "__main__":
    input_size, hidden_layer, output_size = 64, 32, 10
    batch = 8

    key = jax.random.PRNGKey(0)
    kx, kp = jax.random.split(key)
    x = jax.random.normal(kx, (batch, input_size), jnp.float32)
    params = init_params(kp, input_size, hidden_layer, output_size)

    # One-time param prep (pad + bf16 cast) hoisted out of the forward path.
    prepped, out_f = prepare_params(params)
    prepped = jax.block_until_ready(prepped)

    out = jax.block_until_ready(mlp_forward(x, prepped, out_f))
    ref = mlp_reference(x, params)
    assert out.shape == (batch, output_size)
    # fc1 in f32; bf16 hidden activations for fc2/fc3 -> slightly loosened tolerance.
    assert jnp.allclose(out, ref, atol=2e-2, rtol=2e-2), float(jnp.max(jnp.abs(out - ref)))
    print("KERNEL_OK")
</pallas_src>

<mosaic_0001>
module attributes {stable_mosaic.version = 11 : i64} {
  func.func @mlp_kernel(%arg0: i32, %arg1: memref<8x64xf32, #tpu.memory_space<vmem>>, %arg2: memref<64x128xf32, #tpu.memory_space<vmem>>, %arg3: memref<1x128xf32, #tpu.memory_space<vmem>>, %arg4: memref<128x128xbf16, #tpu.memory_space<vmem>>, %arg5: memref<1x128xf32, #tpu.memory_space<vmem>>, %arg6: memref<128x128xbf16, #tpu.memory_space<vmem>>, %arg7: memref<1x128xf32, #tpu.memory_space<vmem>>, %arg8: memref<8x128xf32, #tpu.memory_space<vmem>>) attributes {dimension_semantics = [#tpu.dimension_semantics<parallel>], iteration_bounds = array<i64: 1>, scalar_prefetch = 0 : i64, scratch_operands = 0 : i64, tpu.core_type = #tpu.core_type<tc>, window_params = [{transform_indices = @transform_0, window_bounds = array<i64: 8, 64>}, {pipeline_mode = #tpu.pipeline_mode<synchronous>, transform_indices = @transform_1, window_bounds = array<i64: 64, 128>}, {pipeline_mode = #tpu.pipeline_mode<synchronous>, transform_indices = @transform_2, window_bounds = array<i64: 1, 128>}, {pipeline_mode = #tpu.pipeline_mode<synchronous>, transform_indices = @transform_3, window_bounds = array<i64: 128, 128>}, {pipeline_mode = #tpu.pipeline_mode<synchronous>, transform_indices = @transform_4, window_bounds = array<i64: 1, 128>}, {pipeline_mode = #tpu.pipeline_mode<synchronous>, transform_indices = @transform_5, window_bounds = array<i64: 128, 128>}, {pipeline_mode = #tpu.pipeline_mode<synchronous>, transform_indices = @transform_6, window_bounds = array<i64: 1, 128>}, {transform_indices = @transform_7, window_bounds = array<i64: 8, 128>}]} {
    %c0 = arith.constant 0 : index
    %c0_0 = arith.constant 0 : index
    %0 = vector.load %arg1[%c0, %c0_0] : memref<8x64xf32, #tpu.memory_space<vmem>>, vector<8x64xf32>
    %c0_1 = arith.constant 0 : index
    %c0_2 = arith.constant 0 : index
    %1 = vector.load %arg2[%c0_1, %c0_2] : memref<64x128xf32, #tpu.memory_space<vmem>>, vector<64x128xf32>
    %cst = arith.constant dense<0.000000e+00> : vector<8x128xf32>
    %2 = tpu.matmul %0, %1, %cst {dimension_numbers = #tpu.dot_dimension_numbers<[1], [0], [0], [1], [0, 0, 1, 1], [], []>} : vector<8x64xf32>, vector<64x128xf32>, vector<8x128xf32> -> vector<8x128xf32>
    %c0_3 = arith.constant 0 : index
    %c0_4 = arith.constant 0 : index
    %3 = vector.load %arg3[%c0_3, %c0_4] : memref<1x128xf32, #tpu.memory_space<vmem>>, vector<1x128xf32>
    %4 = vector.broadcast %3 : vector<1x128xf32> to vector<8x128xf32>
    %5 = arith.addf %2, %4 : vector<8x128xf32>
    %cst_5 = arith.constant 0.000000e+00 : f32
    %6 = vector.broadcast %cst_5 : f32 to vector<8x128xf32>
    %7 = arith.maximumf %5, %6 : vector<8x128xf32>
    %8 = arith.truncf %7 : vector<8x128xf32> to vector<8x128xbf16>
    %c0_6 = arith.constant 0 : index
    %c0_7 = arith.constant 0 : index
    %9 = vector.load %arg4[%c0_6, %c0_7] : memref<128x128xbf16, #tpu.memory_space<vmem>>, vector<128x128xbf16>
    %cst_8 = arith.constant dense<0.000000e+00> : vector<8x128xf32>
    %10 = tpu.matmul %8, %9, %cst_8 {dimension_numbers = #tpu.dot_dimension_numbers<[1], [0], [0], [1], [0, 0, 1, 1], [], []>} : vector<8x128xbf16>, vector<128x128xbf16>, vector<8x128xf32> -> vector<8x128xf32>
    %c0_9 = arith.constant 0 : index
    %c0_10 = arith.constant 0 : index
    %11 = vector.load %arg5[%c0_9, %c0_10] : memref<1x128xf32, #tpu.memory_space<vmem>>, vector<1x128xf32>
    %12 = vector.broadcast %11 : vector<1x128xf32> to vector<8x128xf32>
    %13 = arith.addf %10, %12 : vector<8x128xf32>
    %cst_11 = arith.constant 0.000000e+00 : f32
    %14 = vector.broadcast %cst_11 : f32 to vector<8x128xf32>
    %15 = arith.maximumf %13, %14 : vector<8x128xf32>
    %16 = arith.truncf %15 : vector<8x128xf32> to vector<8x128xbf16>
    %c0_12 = arith.constant 0 : index
    %c0_13 = arith.constant 0 : index
    %17 = vector.load %arg6[%c0_12, %c0_13] : memref<128x128xbf16, #tpu.memory_space<vmem>>, vector<128x128xbf16>
    %cst_14 = arith.constant dense<0.000000e+00> : vector<8x128xf32>
    %18 = tpu.matmul %16, %17, %cst_14 {dimension_numbers = #tpu.dot_dimension_numbers<[1], [0], [0], [1], [0, 0, 1, 1], [], []>} : vector<8x128xbf16>, vector<128x128xbf16>, vector<8x128xf32> -> vector<8x128xf32>
    %c0_15 = arith.constant 0 : index
    %c0_16 = arith.constant 0 : index
    %19 = vector.load %arg7[%c0_15, %c0_16] : memref<1x128xf32, #tpu.memory_space<vmem>>, vector<1x128xf32>
    %20 = vector.broadcast %19 : vector<1x128xf32> to vector<8x128xf32>
    %21 = arith.addf %18, %20 : vector<8x128xf32>
    %c0_17 = arith.constant 0 : index
    %c0_18 = arith.constant 0 : index
    %22 = vector.load %arg8[%c0_17, %c0_18] : memref<8x128xf32, #tpu.memory_space<vmem>>, vector<8x128xf32>
    tpu.vector_store %arg8[%c0_17, %c0_18], %21 {strides = array<i32>} : memref<8x128xf32, #tpu.memory_space<vmem>>, vector<8x128xf32>,
    return
  }
  func.func @transform_0(%arg0: i32) -> (i32, i32) {
    %c0_i32 = arith.constant 0 : i32
    %c0_i32_0 = arith.constant 0 : i32
    return %arg0, %c0_i32 : i32, i32
  }
  func.func @transform_1(%arg0: i32) -> (i32, i32) {
    %c0_i32 = arith.constant 0 : i32
    %c0_i32_0 = arith.constant 0 : i32
    %c0_i32_1 = arith.constant 0 : i32
    return %c0_i32, %c0_i32_0 : i32, i32
  }
  func.func @transform_2(%arg0: i32) -> (i32, i32) {
    %c0_i32 = arith.constant 0 : i32
    %c0_i32_0 = arith.constant 0 : i32
    %c0_i32_1 = arith.constant 0 : i32
    return %c0_i32, %c0_i32_0 : i32, i32
  }
  func.func @transform_3(%arg0: i32) -> (i32, i32) {
    %c0_i32 = arith.constant 0 : i32
    %c0_i32_0 = arith.constant 0 : i32
    %c0_i32_1 = arith.constant 0 : i32
    return %c0_i32, %c0_i32_0 : i32, i32
  }
  func.func @transform_4(%arg0: i32) -> (i32, i32) {
    %c0_i32 = arith.constant 0 : i32
    %c0_i32_0 = arith.constant 0 : i32
    %c0_i32_1 = arith.constant 0 : i32
    return %c0_i32, %c0_i32_0 : i32, i32
  }
  func.func @transform_5(%arg0: i32) -> (i32, i32) {
    %c0_i32 = arith.constant 0 : i32
    %c0_i32_0 = arith.constant 0 : i32
    %c0_i32_1 = arith.constant 0 : i32
    return %c0_i32, %c0_i32_0 : i32, i32
  }
  func.func @transform_6(%arg0: i32) -> (i32, i32) {
    %c0_i32 = arith.constant 0 : i32
    %c0_i32_0 = arith.constant 0 : i32
    %c0_i32_1 = arith.constant 0 : i32
    return %c0_i32, %c0_i32_0 : i32, i32
  }
  func.func @transform_7(%arg0: i32) -> (i32, i32) {
    %c0_i32 = arith.constant 0 : i32
    %c0_i32_0 = arith.constant 0 : i32
    return %arg0, %c0_i32 : i32, i32
  }
}

</mosaic_0001>

<llo_original>
// kernel: mlp_forward.1
$region0: #{mlp_forward.1}
  #allocation0 [shape = 'u32[]', space=smem, size = 0x4, offset = 0x4, fixed_abs, tag = 'smem constant byte address 0x4 - core index']
  #allocation1 [shape = 'u32[72,128]{1,0:T(1,128)}', space=vmem, size = 0x9000, scoped, tag = 'internal scratch']
  %s0 = inlined_call_operand.hbm [shape: f32[8,64], index: 0, kind: input, shape index: {}]
  %s1 = inlined_call_operand.hbm [shape: f32[64,128], index: 1, kind: input, shape index: {}]
  %s2 = inlined_call_operand.vmem [shape: f32[1,128], index: 2, kind: input, shape index: {}]
  %s3 = inlined_call_operand.hbm [shape: bf16[128,128], index: 3, kind: input, shape index: {}]
  %s4 = inlined_call_operand.vmem [shape: f32[1,128], index: 4, kind: input, shape index: {}]
  %s5 = inlined_call_operand.hbm [shape: bf16[128,128], index: 5, kind: input, shape index: {}]
  %s6 = inlined_call_operand.vmem [shape: f32[1,128], index: 6, kind: input, shape index: {}]
  %s7 = inlined_call_operand.hbm [shape: f32[8,128], index: 7, kind: output, shape index: {}]
  %s8 = sld [smem:[#allocation0]]
  $region54: #{mlp_forward.1} parent=0
    _
  %s10 = ssub.s32 1, %s8
  %s11 = scalar_select 0, %s10, %s8
  $region1: #{mlp_forward.1} parent=0
    #allocation2 [shape = 'u8[4096]{0}', space=vmem, size = 0x1000, scoped, tag = 'input window, operand 0, single buffered']
    #allocation3 [shape = 's32[1]{0}', space=sflag, size = 0x4, scoped, tag = 'scoped memory for mlp_forward.1']
    #allocation4 [shape = 's32[1]{0}', space=sflag, size = 0x4, scoped, tag = 'scoped memory for mlp_forward.1']
    #allocation5 [shape = 'u8[32768]{0}', space=vmem, size = 0x8000, scoped, tag = 'input window, operand 1, single buffered']
    #allocation6 [shape = 's32[1]{0}', space=sflag, size = 0x4, scoped, tag = 'scoped memory for mlp_forward.1']
    #allocation7 [shape = 'u8[32768]{0}', space=vmem, size = 0x8000, scoped, tag = 'input window, operand 3, single buffered']
    #allocation8 [shape = 'u8[32768]{0}', space=vmem, size = 0x8000, scoped, tag = 'input window, operand 5, single buffered']
    #allocation9 [shape = 's32[1]{0}', space=sflag, size = 0x4, scoped, tag = 'scoped memory for mlp_forward.1']
    #allocation10 [shape = 'u8[4096]{0}', space=vmem, size = 0x1000, scoped, tag = 'output window, operand 0, single buffered']
    %12 = vsyncpa [#allocation3], 0
    %13 = vsyncpa [#allocation6], 0
    %14 = vsyncpa [#allocation9], 0
    %15 = vsyncpa [#allocation4], 0
    // Predicated region
    $region2: #{mlp_forward.1} parent=1 // pred_check
      _
    $region3: #{mlp_forward.1} parent=1 // pred_check_branch
      %17 = sbr.rel (0) target = $region5
    $region4: #{mlp_forward.1} parent=1 // pred_region
      %19 = vsyncadd [#allocation3], 0
      %s21 = sshll.u32 %s0, 4
      %s22 = int_to_ptr.hbm [resolvable:$true] %s21
      %s23 = sshll.u32 [#allocation2], 4
      %s24 = int_to_ptr.vmem [resolvable:$true] %s23
      %26 = dma.hbm_to_vmem [thread:$0]  %s22, 128, %s24, [#allocation3]
    $region5: #{mlp_forward.1} parent=1 // pred_fallthru
      _
    // Predicated region
    $region6: #{mlp_forward.1} parent=1 // pred_check
      _
    $region7: #{mlp_forward.1} parent=1 // pred_check_branch
      %28 = sbr.rel (0) target = $region9
    $region8: #{mlp_forward.1} parent=1 // pred_region
      %30 = vsyncadd [#allocation6], 0
      %s31 = sshll.u32 %s1, 4
      %s32 = int_to_ptr.hbm [resolvable:$true] %s31
      %s33 = sshll.u32 [#allocation5], 4
      %s34 = int_to_ptr.vmem [resolvable:$true] %s33
      %39 = dma.hbm_to_vmem [thread:$0]  %s32, 1024, %s34, [#allocation6], 128, 128, 8
    $region9: #{mlp_forward.1} parent=1 // pred_fallthru
      _
    // Predicated region
    $region10: #{mlp_forward.1} parent=1 // pred_check
      _
    $region11: #{mlp_forward.1} parent=1 // pred_check_branch
      %41 = sbr.rel (0) target = $region13
    $region12: #{mlp_forward.1} parent=1 // pred_region
      _
    $region13: #{mlp_forward.1} parent=1 // pred_fallthru
      _
    // Predicated region
    $region14: #{mlp_forward.1} parent=1 // pred_check
      _
    $region15: #{mlp_forward.1} parent=1 // pred_check_branch
      %43 = sbr.rel (0) target = $region17
    $region16: #{mlp_forward.1} parent=1 // pred_region
      %45 = vsyncadd [#allocation6], 0
      %s46 = sshll.u32 %s3, 4
      %s47 = int_to_ptr.hbm [resolvable:$true] %s46
      %s48 = sshll.u32 [#allocation7], 4
      %s49 = int_to_ptr.vmem [resolvable:$true] %s48
      %54 = dma.hbm_to_vmem [thread:$0]  %s47, 1024, %s49, [#allocation6], 64, 64, 4
    $region17: #{mlp_forward.1} parent=1 // pred_fallthru
      _
    // Predicated region
    $region18: #{mlp_forward.1} parent=1 // pred_check
      _
    $region19: #{mlp_forward.1} parent=1 // pred_check_branch
      %56 = sbr.rel (0) target = $region21
    $region20: #{mlp_forward.1} parent=1 // pred_region
      _
    $region21: #{mlp_forward.1} parent=1 // pred_fallthru
      _
    // Predicated region
    $region22: #{mlp_forward.1} parent=1 // pred_check
      _
    $region23: #{mlp_forward.1} parent=1 // pred_check_branch
      %58 = sbr.rel (0) target = $region25
    $region24: #{mlp_forward.1} parent=1 // pred_region
      %60 = vsyncadd [#allocation9], 0
      %s61 = sshll.u32 %s5, 4
      %s62 = int_to_ptr.hbm [resolvable:$true] %s61
      %s63 = sshll.u32 [#allocation8], 4
      %s64 = int_to_ptr.vmem [resolvable:$true] %s63
      %69 = dma.hbm_to_vmem [thread:$0]  %s62, 1024, %s64, [#allocation9], 64, 64, 4
    $region25: #{mlp_forward.1} parent=1 // pred_fallthru
      _
    // Predicated region
    $region26: #{mlp_forward.1} parent=1 // pred_check
      _
    $region27: #{mlp_forward.1} parent=1 // pred_check_branch
      %71 = sbr.rel (0) target = $region29
    $region28: #{mlp_forward.1} parent=1 // pred_region
      _
    $region29: #{mlp_forward.1} parent=1 // pred_fallthru
      _
    // Predicated region
    $region30: #{mlp_forward.1} parent=1 // pred_check
      _
    $region31: #{mlp_forward.1} parent=1 // pred_check_branch
      %73 = sbr.rel (0) target = $region33
    $region32: #{mlp_forward.1} parent=1 // pred_region
      %75 = dma.done [#allocation3], 128
    $region33: #{mlp_forward.1} parent=1 // pred_fallthru
      _
    // Predicated region
    $region34: #{mlp_forward.1} parent=1 // pred_check
      _
    $region35: #{mlp_forward.1} parent=1 // pred_check_branch
      %77 = sbr.rel (0) target = $region37
    $region36: #{mlp_forward.1} parent=1 // pred_region
      %79 = dma.done [#allocation6], 1024
    $region37: #{mlp_forward.1} parent=1 // pred_fallthru
      _
    // Predicated region
    $region38: #{mlp_forward.1} parent=1 // pred_check
      _
    $region39: #{mlp_forward.1} parent=1 // pred_check_branch
      %81 = sbr.rel (0) target = $region41
    $region40: #{mlp_forward.1} parent=1 // pred_region
      %83 = dma.done [#allocation6], 1024
    $region41: #{mlp_forward.1} parent=1 // pred_fallthru
      _
    // Predicated region
    $region42: #{mlp_forward.1} parent=1 // pred_check
      _
    $region43: #{mlp_forward.1} parent=1 // pred_check_branch
      %85 = sbr.rel (0) target = $region45
    $region44: #{mlp_forward.1} parent=1 // pred_region
      %87 = dma.done [#allocation9], 1024
    $region45: #{mlp_forward.1} parent=1 // pred_fallthru
      _
    %v88 = vld [vmem:[#allocation2] sm:$0xff]
    %v89 = vld [vmem:[#allocation5] sm:$0xff]
    %v90 = vld [vmem:[#allocation5 + $0x8] sm:$0xff]
    %v91 = vld [vmem:[#allocation5 + $0x10] sm:$0xff]
    %v92 = vld [vmem:[#allocation5 + $0x18] sm:$0xff]
    %v93 = vld [vmem:[#allocation5 + $0x20] sm:$0xff]
    %v94 = vld [vmem:[#allocation5 + $0x28] sm:$0xff]
    %v95 = vld [vmem:[#allocation5 + $0x30] sm:$0xff]
    %v96 = vld [vmem:[#allocation5 + $0x38] sm:$0xff]
    %v97 = vld [vmem:[%s2] sm:$0x1]
    %v99 = vperm.slane %v97, 0
    %vm101 = vcmask 523264
    %v103 = vsel %vm101, %v88, 0
    %105 = vmatpush.msra.mxu0 0.0
    %106 = vmatpush.msra.mxu0 0.0
    %107 = vmatpush.msra.mxu0 0.0
    %108 = vmatpush.msra.mxu0 0.0
    %109 = vmatpush.msra.mxu0 0.0
    %110 = vmatpush.msra.mxu0 0.0
    %111 = vmatpush.msra.mxu0 0.0
    %112 = vmatpush.msra.mxu0 0.0
    %113 = vmatpush.msra.mxu0 %v96
    %114 = vmatpush.msra.mxu0 %v95
    %115 = vmatpush.msra.mxu0 %v94
    %116 = vmatpush.msra.mxu0 %v93
    %117 = vmatpush.msra.mxu0 %v92
    %118 = vmatpush.msra.mxu0 %v91
    %119 = vmatpush.msra.mxu0 %v90
    %120 = vmatpush.msra.mxu0 %v89
    %121 = vmatmul.f32.gmra.mxu0 %v103
    %v122 = vpop.f32.mrf.mxu0
    %v123 = vadd.f32 %v99, %v122
    %124 = vdwg.mxu0
    %v125 = vmax.f32 %v123, 0.0
    %v126 = vpack.c.bf16 %v125, %v125
    %v127 = vld [vmem:[#allocation7] sm:$0xf]
    %v128 = vld [vmem:[#allocation7 + $0x4] sm:$0xf]
    %v129 = vld [vmem:[#allocation7 + $0x8] sm:$0xf]
    %v130 = vld [vmem:[#allocation7 + $0xc] sm:$0xf]
    %v131 = vld [vmem:[#allocation7 + $0x10] sm:$0xf]
    %v132 = vld [vmem:[#allocation7 + $0x14] sm:$0xf]
    %v133 = vld [vmem:[#allocation7 + $0x18] sm:$0xf]
    %v134 = vld [vmem:[#allocation7 + $0x1c] sm:$0xf]
    %v135 = vld [vmem:[#allocation7 + $0x20] sm:$0xf]
    %v136 = vld [vmem:[#allocation7 + $0x24] sm:$0xf]
    %v137 = vld [vmem:[#allocation7 + $0x28] sm:$0xf]
    %v138 = vld [vmem:[#allocation7 + $0x2c] sm:$0xf]
    %v139 = vld [vmem:[#allocation7 + $0x30] sm:$0xf]
    %v140 = vld [vmem:[#allocation7 + $0x34] sm:$0xf]
    %v141 = vld [vmem:[#allocation7 + $0x38] sm:$0xf]
    %v142 = vld [vmem:[#allocation7 + $0x3c] sm:$0xf]
    %v143 = vld [vmem:[%s4] sm:$0x1]
    %v145 = vperm.slane %v143, 0
    %v163 = vunpack.c.l.b16 %v127
    %v164 = vunpack.c.l.b16 %v128
    %v165 = vunpack.c.l.b16 %v129
    %v166 = vunpack.c.l.b16 %v130
    %v167 = vunpack.c.l.b16 %v131
    %v168 = vunpack.c.l.b16 %v132
    %v169 = vunpack.c.l.b16 %v133
    %v170 = vunpack.c.l.b16 %v134
    %v171 = vunpack.c.l.b16 %v135
    %v172 = vunpack.c.l.b16 %v136
    %v173 = vunpack.c.l.b16 %v137
    %v174 = vunpack.c.l.b16 %v138
    %v175 = vunpack.c.l.b16 %v139
    %v176 = vunpack.c.l.b16 %v140
    %v177 = vunpack.c.l.b16 %v141
    %v178 = vunpack.c.l.b16 %v142
    %v179 = vpack.c.b16 %v164, %v163
    %v180 = vpack.c.b16 %v166, %v165
    %v181 = vpack.c.b16 %v168, %v167
    %v182 = vpack.c.b16 %v170, %v169
    %v183 = vpack.c.b16 %v172, %v171
    %v184 = vpack.c.b16 %v174, %v173
    %v185 = vpack.c.b16 %v176, %v175
    %v186 = vpack.c.b16 %v178, %v177
    %195 = vmatpush.bf16.msra.mxu0 %v186
    %196 = vmatpush.bf16.msra.mxu0 %v185
    %197 = vmatpush.bf16.msra.mxu0 %v184
    %198 = vmatpush.bf16.msra.mxu0 %v183
    %199 = vmatpush.bf16.msra.mxu0 %v182
    %200 = vmatpush.bf16.msra.mxu0 %v181
    %201 = vmatpush.bf16.msra.mxu0 %v180
    %202 = vmatpush.bf16.msra.mxu0 %v179
    %203 = vmatmul.bf16.gmra.mxu0 %v126
    %v204 = vpop.f32.mrf.mxu0
    %v205 = vadd.f32 %v145, %v204
    %v206 = vpop.f32.mrf.mxu0
    %207 = vdwg.mxu0
    %v208 = vmax.f32 %v205, 0.0
    %v209 = vpack.c.bf16 %v208, %v208
    %v210 = vld [vmem:[#allocation8] sm:$0xf]
    %v211 = vld [vmem:[#allocation8 + $0x4] sm:$0xf]
    %v212 = vld [vmem:[#allocation8 + $0x8] sm:$0xf]
    %v213 = vld [vmem:[#allocation8 + $0xc] sm:$0xf]
    %v214 = vld [vmem:[#allocation8 + $0x10] sm:$0xf]
    %v215 = vld [vmem:[#allocation8 + $0x14] sm:$0xf]
    %v216 = vld [vmem:[#allocation8 + $0x18] sm:$0xf]
    %v217 = vld [vmem:[#allocation8 + $0x1c] sm:$0xf]
    %v218 = vld [vmem:[#allocation8 + $0x20] sm:$0xf]
    %v219 = vld [vmem:[#allocation8 + $0x24] sm:$0xf]
    %v220 = vld [vmem:[#allocation8 + $0x28] sm:$0xf]
    %v221 = vld [vmem:[#allocation8 + $0x2c] sm:$0xf]
    %v222 = vld [vmem:[#allocation8 + $0x30] sm:$0xf]
    %v223 = vld [vmem:[#allocation8 + $0x34] sm:$0xf]
    %v224 = vld [vmem:[#allocation8 + $0x38] sm:$0xf]
    %v225 = vld [vmem:[#allocation8 + $0x3c] sm:$0xf]
    %v226 = vld [vmem:[%s6] sm:$0x1]
    %v228 = vperm.slane %v226, 0
    %v246 = vunpack.c.l.b16 %v210
    %v247 = vunpack.c.l.b16 %v211
    %v248 = vunpack.c.l.b16 %v212
    %v249 = vunpack.c.l.b16 %v213
    %v250 = vunpack.c.l.b16 %v214
    %v251 = vunpack.c.l.b16 %v215
    %v252 = vunpack.c.l.b16 %v216
    %v253 = vunpack.c.l.b16 %v217
    %v254 = vunpack.c.l.b16 %v218
    %v255 = vunpack.c.l.b16 %v219
    %v256 = vunpack.c.l.b16 %v220
    %v257 = vunpack.c.l.b16 %v221
    %v258 = vunpack.c.l.b16 %v222
    %v259 = vunpack.c.l.b16 %v223
    %v260 = vunpack.c.l.b16 %v224
    %v261 = vunpack.c.l.b16 %v225
    %v262 = vpack.c.b16 %v247, %v246
    %v263 = vpack.c.b16 %v249, %v248
    %v264 = vpack.c.b16 %v251, %v250
    %v265 = vpack.c.b16 %v253, %v252
    %v266 = vpack.c.b16 %v255, %v254
    %v267 = vpack.c.b16 %v257, %v256
    %v268 = vpack.c.b16 %v259, %v258
    %v269 = vpack.c.b16 %v261, %v260
    %278 = vmatpush.bf16.msra.mxu0 %v269
    %279 = vmatpush.bf16.msra.mxu0 %v268
    %280 = vmatpush.bf16.msra.mxu0 %v267
    %281 = vmatpush.bf16.msra.mxu0 %v266
    %282 = vmatpush.bf16.msra.mxu0 %v265
    %283 = vmatpush.bf16.msra.mxu0 %v264
    %284 = vmatpush.bf16.msra.mxu0 %v263
    %285 = vmatpush.bf16.msra.mxu0 %v262
    %286 = vmatmul.bf16.gmra.mxu0 %v209
    %v287 = vpop.f32.mrf.mxu0
    %v288 = vadd.f32 %v228, %v287
    %v289 = vpop.f32.mrf.mxu0
    %290 = vdwg.mxu0
    %291 = vst [vmem:[#allocation10] sm:$0xff] %v288
    // Predicated region
    $region46: #{mlp_forward.1} parent=1 // pred_check
      _
    $region47: #{mlp_forward.1} parent=1 // pred_check_branch
      %293 = sbr.rel (0) target = $region49
    $region48: #{mlp_forward.1} parent=1 // pred_region
      %295 = vsyncadd [#allocation4], 0
      %s297 = sshll.u32 [#allocation10], 4
      %s298 = int_to_ptr.vmem [resolvable:$true] %s297
      %s299 = sshll.u32 %s7, 4
      %s300 = int_to_ptr.hbm [resolvable:$true] %s299
      %302 = dma.vmem_to_hbm [thread:$0]  %s298, 128, %s300, [#allocation4]
    $region49: #{mlp_forward.1} parent=1 // pred_fallthru
      _
    // Predicated region
    $region50: #{mlp_forward.1} parent=1 // pred_check
      _
    $region51: #{mlp_forward.1} parent=1 // pred_check_branch
      %304 = sbr.rel (0) target = $region53
    $region52: #{mlp_forward.1} parent=1 // pred_region
      %306 = dma.done [#allocation4], 128
    $region53: #{mlp_forward.1} parent=1 // pred_fallthru
      _
    %307 = vsyncpa [#allocation3], 1
    %308 = vsyncpa [#allocation6], 1
    %309 = vsyncpa [#allocation9], 1
    %310 = vsyncpa [#allocation4], 1

</llo_original>
